<compile_context>
chip_gen: v6e
topology: v6e:2x2x1
jax: 0.10.0
libtpu: 0.0.40
codegen_flags: <defaults>
</compile_context>

<pallas_src>
import functools
import math

import jax
import jax.numpy as jnp
from jax.experimental import pallas as pl
from jax.experimental.pallas import tpu as pltpu

HIDDEN = 50
_LANE = 128
_SUBLANE = 8


def _round_up(x, m):
    return ((x + m - 1) // m) * m


def _vmem_budget_bytes():
    """Per-generation VMEM budget for tile selection (conservative)."""
    try:
        cap = int(pltpu.get_tpu_info().vmem_capacity_bytes)
        return min(cap // 8, 14 << 20)      # v5e/v6e -> 14 MiB, v7x -> 8 MiB
    except Exception:
        return 12 << 20


def _pick_batch_tile(B, F, D, x_itemsize, w_itemsize, budget):
    """Largest multiple of 8 (<=512) whose block set fits the VMEM budget."""
    F_l = _round_up(F, _LANE)
    D_l = _round_up(D, _LANE)
    H_l = _round_up(HIDDEN, _LANE)
    # Resident weights/biases are still double-buffered by the pipeline.
    fixed = 2 * (_round_up(F, _SUBLANE) * H_l * w_itemsize
                 + _round_up(HIDDEN, _SUBLANE) * D_l * w_itemsize
                 + _SUBLANE * H_l * 4 + _SUBLANE * D_l * 4)
    # Double-buffered x/out streams + in-kernel h/y intermediates, per batch row.
    per_row = 2 * (F_l * x_itemsize + D_l * 4) + (H_l + D_l) * 4
    avail = max(budget - fixed, 2 * _SUBLANE * per_row)
    tb = min(512, avail // per_row)
    tb = max(_SUBLANE, (tb // _SUBLANE) * _SUBLANE)
    if B >= 128:                       # guarantee >= 2 grid steps (v7x megacore)
        tb = min(tb, _round_up(-(-B // 2), _SUBLANE))
    tb = min(tb, _round_up(B, _SUBLANE))
    return max(tb, _SUBLANE)


def _classifier_kernel(x_ref, w1_ref, b1_ref, w2_ref, b2_ref, out_ref, *,
                       compute_dtype):
    # x_ref:  (TB, F)   w1_ref: (F, 50)   b1_ref: (1, 50)
    # w2_ref: (50, D)   b2_ref: (1, D)    out_ref: (TB, D)
    x = x_ref[...].astype(compute_dtype)               # in-register cast (VPU, free)
    w1 = w1_ref[...].astype(compute_dtype)
    h = jnp.dot(x, w1, preferred_element_type=jnp.float32) + b1_ref[...]
    h = jnp.maximum(h, 0.0)                            # ReLU
    # TODO(synk): nn.Dropout(p=0.5) is identity in eval mode; the train-mode random
    # mask + 2x rescale is not reproduced here.
    h = h.astype(compute_dtype)                        # register-resident hidden
    w2 = w2_ref[...].astype(compute_dtype)
    y = jnp.dot(h, w2, preferred_element_type=jnp.float32) + b2_ref[...]
    out_ref[...] = y.astype(out_ref.dtype)


@functools.partial(jax.jit, static_argnames=("compute_dtype",))
def classifier_forward(x, w1, b1, w2, b2, compute_dtype=jnp.float32):
    """x: (B, in_features) or (B, C, 1, 1).  Returns (B, domains) in float32."""
    if x.ndim == 4:
        assert x.shape[2] == 1 and x.shape[3] == 1, "spatial dims must be [1, 1]"
    x2 = x.reshape(x.shape[0], -1)                     # flatten(start_dim=1)
    B, F = x2.shape
    Fw, H = w1.shape
    Hw, D = w2.shape
    assert F == Fw and H == HIDDEN and Hw == HIDDEN

    x_isz = jnp.dtype(x2.dtype).itemsize
    w_isz = jnp.dtype(w1.dtype).itemsize
    TB = _pick_batch_tile(B, F, D, x_isz, w_isz, _vmem_budget_bytes())
    grid = (pl.cdiv(B, TB),)                           # ragged last tile is masked

    # Explicit scoped-VMEM limit sized from the actual block set (+ headroom),
    # never below any generation's default (16 MiB) nor above a v7x-safe 32 MiB.
    F_l = _round_up(F, _LANE)
    D_l = _round_up(D, _LANE)
    H_l = _round_up(HIDDEN, _LANE)
    est = (2 * TB * (F_l * x_isz + D_l * 4)
           + 2 * (_round_up(F, _SUBLANE) * H_l
                  + _round_up(HIDDEN, _SUBLANE) * D_l) * w_isz
           + 2 * _SUBLANE * (H_l + D_l) * 4
           + 2 * TB * (H_l + D_l) * 4)
    vmem_limit = int(min(32 << 20, max(2 * est, 16 << 20)))

    kernel = functools.partial(_classifier_kernel, compute_dtype=compute_dtype)
    out = pl.pallas_call(
        kernel,
        out_shape=jax.ShapeDtypeStruct((B, D), jnp.float32),
        grid=grid,
        in_specs=[
            pl.BlockSpec((TB, F), lambda i: (i, 0)),   # x streamed, no pad/copy
            pl.BlockSpec((Fw, H), lambda i: (0, 0)),   # weights VMEM-resident
            pl.BlockSpec((1, H), lambda i: (0, 0)),    # bias resident
            pl.BlockSpec((Hw, D), lambda i: (0, 0)),   # weights resident
            pl.BlockSpec((1, D), lambda i: (0, 0)),    # bias resident
        ],
        out_specs=pl.BlockSpec((TB, D), lambda i: (i, 0)),  # narrow, minimal writeback
        compiler_params=pltpu.CompilerParams(
            dimension_semantics=("parallel",),         # independent batch tiles
            vmem_limit_bytes=vmem_limit),
    )(x2, w1, b1.reshape(1, H), w2, b2.reshape(1, D))
    return out


def init_classifier_params(key, in_features, domains):
    """nn.Linear-style init (uniform +/- 1/sqrt(fan_in)); weights stored as (in, out)."""
    k1, k2, k3, k4 = jax.random.split(key, 4)
    bound1 = 1.0 / math.sqrt(in_features)
    w1 = jax.random.uniform(k1, (in_features, HIDDEN), jnp.float32, -bound1, bound1)
    b1 = jax.random.uniform(k2, (HIDDEN,), jnp.float32, -bound1, bound1)
    bound2 = 1.0 / math.sqrt(HIDDEN)
    w2 = jax.random.uniform(k3, (HIDDEN, domains), jnp.float32, -bound2, bound2)
    b2 = jax.random.uniform(k4, (domains,), jnp.float32, -bound2, bound2)
    return w1, b1, w2, b2


def _ref_forward(x2, w1, b1, w2, b2):
    h = jnp.maximum(
        jnp.dot(x2.astype(jnp.float32), w1, precision=jax.lax.Precision.HIGHEST) + b1,
        0.0)
    return jnp.dot(h, w2, precision=jax.lax.Precision.HIGHEST) + b2


if __name__ == "__main__":
    key = jax.random.PRNGKey(0)
    kx1, kp1, kx2, kp2 = jax.random.split(key, 4)

    # --- Case 1: module-shaped 4-D NCHW input with spatial [1, 1] ----------------
    batch, in_features, domains = 4, 32, 4
    x = jax.random.normal(kx1, (batch, in_features, 1, 1), jnp.float32)
    w1, b1, w2, b2 = init_classifier_params(kp1, in_features, domains)

    y = classifier_forward(x, w1, b1, w2, b2)
    jax.block_until_ready(y)
    y_ref = _ref_forward(x.reshape(batch, -1), w1, b1, w2, b2)
    assert y.shape == (batch, domains)
    assert jnp.allclose(y, y_ref, atol=1e-3, rtol=1e-3)

    # --- Case 2: larger ragged batch (grid > 1, ragged last tile, no padding) ----
    B2, F2, D2 = 1100, 200, 7
    x_big = jax.random.normal(kx2, (B2, F2), jnp.float32)
    p2 = init_classifier_params(kp2, F2, D2)

    y2 = classifier_forward(x_big, *p2)
    jax.block_until_ready(y2)
    y2_ref = _ref_forward(x_big, *p2)
    assert y2.shape == (B2, D2)
    assert jnp.allclose(y2, y2_ref, atol=1e-3, rtol=1e-3)

    # --- Case 3: bf16 producer path (x already bf16 -> halved HBM read) ----------
    x_big_bf16 = x_big.astype(jnp.bfloat16)
    y2_bf16 = classifier_forward(x_big_bf16, *p2, compute_dtype=jnp.bfloat16)
    jax.block_until_ready(y2_bf16)
    assert jnp.allclose(y2_bf16, y2_ref, atol=0.1, rtol=0.1)

    print("KERNEL_OK")
</pallas_src>

<mosaic_0001>
module attributes {stable_mosaic.version = 11 : i64} {
  func.func @_classifier_kernel(%arg0: i32, %arg1: memref<8x32xf32, #tpu.memory_space<vmem>>, %arg2: memref<32x50xf32, #tpu.memory_space<vmem>>, %arg3: memref<1x50xf32, #tpu.memory_space<vmem>>, %arg4: memref<50x4xf32, #tpu.memory_space<vmem>>, %arg5: memref<1x4xf32, #tpu.memory_space<vmem>>, %arg6: memref<8x4xf32, #tpu.memory_space<vmem>>) attributes {dimension_semantics = [#tpu.dimension_semantics<parallel>], iteration_bounds = array<i64: 1>, scalar_prefetch = 0 : i64, scratch_operands = 0 : i64, tpu.core_type = #tpu.core_type<tc>, window_params = [{transform_indices = @transform_0, window_bounds = array<i64: 8, 32>}, {pipeline_mode = #tpu.pipeline_mode<synchronous>, transform_indices = @transform_1, window_bounds = array<i64: 32, 50>}, {pipeline_mode = #tpu.pipeline_mode<synchronous>, transform_indices = @transform_2, window_bounds = array<i64: 1, 50>}, {pipeline_mode = #tpu.pipeline_mode<synchronous>, transform_indices = @transform_3, window_bounds = array<i64: 50, 4>}, {pipeline_mode = #tpu.pipeline_mode<synchronous>, transform_indices = @transform_4, window_bounds = array<i64: 1, 4>}, {transform_indices = @transform_5, window_bounds = array<i64: 8, 4>}]} {
    %c0 = arith.constant 0 : index
    %c0_0 = arith.constant 0 : index
    %0 = vector.load %arg1[%c0, %c0_0] : memref<8x32xf32, #tpu.memory_space<vmem>>, vector<8x32xf32>
    %c0_1 = arith.constant 0 : index
    %c0_2 = arith.constant 0 : index
    %1 = vector.load %arg2[%c0_1, %c0_2] : memref<32x50xf32, #tpu.memory_space<vmem>>, vector<32x50xf32>
    %cst = arith.constant dense<0.000000e+00> : vector<8x50xf32>
    %2 = tpu.matmul %0, %1, %cst {dimension_numbers = #tpu.dot_dimension_numbers<[1], [0], [0], [1], [0, 0, 1, 1], [], []>} : vector<8x32xf32>, vector<32x50xf32>, vector<8x50xf32> -> vector<8x50xf32>
    %c0_3 = arith.constant 0 : index
    %c0_4 = arith.constant 0 : index
    %3 = vector.load %arg3[%c0_3, %c0_4] : memref<1x50xf32, #tpu.memory_space<vmem>>, vector<1x50xf32>
    %4 = vector.broadcast %3 : vector<1x50xf32> to vector<8x50xf32>
    %5 = arith.addf %2, %4 : vector<8x50xf32>
    %cst_5 = arith.constant 0.000000e+00 : f32
    %6 = vector.broadcast %cst_5 : f32 to vector<8x50xf32>
    %7 = arith.maximumf %5, %6 : vector<8x50xf32>
    %c0_6 = arith.constant 0 : index
    %c0_7 = arith.constant 0 : index
    %8 = vector.load %arg4[%c0_6, %c0_7] : memref<50x4xf32, #tpu.memory_space<vmem>>, vector<50x4xf32>
    %cst_8 = arith.constant dense<0.000000e+00> : vector<8x4xf32>
    %9 = tpu.matmul %7, %8, %cst_8 {dimension_numbers = #tpu.dot_dimension_numbers<[1], [0], [0], [1], [0, 0, 1, 1], [], []>} : vector<8x50xf32>, vector<50x4xf32>, vector<8x4xf32> -> vector<8x4xf32>
    %c0_9 = arith.constant 0 : index
    %c0_10 = arith.constant 0 : index
    %10 = vector.load %arg5[%c0_9, %c0_10] : memref<1x4xf32, #tpu.memory_space<vmem>>, vector<1x4xf32>
    %11 = vector.broadcast %10 : vector<1x4xf32> to vector<8x4xf32>
    %12 = arith.addf %9, %11 : vector<8x4xf32>
    %c0_11 = arith.constant 0 : index
    %c0_12 = arith.constant 0 : index
    %13 = vector.load %arg6[%c0_11, %c0_12] : memref<8x4xf32, #tpu.memory_space<vmem>>, vector<8x4xf32>
    tpu.vector_store %arg6[%c0_11, %c0_12], %12 {strides = array<i32>} : memref<8x4xf32, #tpu.memory_space<vmem>>, vector<8x4xf32>,
    return
  }
  func.func @transform_0(%arg0: i32) -> (i32, i32) {
    %c0_i32 = arith.constant 0 : i32
    %c0_i32_0 = arith.constant 0 : i32
    return %arg0, %c0_i32 : i32, i32
  }
  func.func @transform_1(%arg0: i32) -> (i32, i32) {
    %c0_i32 = arith.constant 0 : i32
    %c0_i32_0 = arith.constant 0 : i32
    %c0_i32_1 = arith.constant 0 : i32
    return %c0_i32, %c0_i32_0 : i32, i32
  }
  func.func @transform_2(%arg0: i32) -> (i32, i32) {
    %c0_i32 = arith.constant 0 : i32
    %c0_i32_0 = arith.constant 0 : i32
    %c0_i32_1 = arith.constant 0 : i32
    return %c0_i32, %c0_i32_0 : i32, i32
  }
  func.func @transform_3(%arg0: i32) -> (i32, i32) {
    %c0_i32 = arith.constant 0 : i32
    %c0_i32_0 = arith.constant 0 : i32
    %c0_i32_1 = arith.constant 0 : i32
    return %c0_i32, %c0_i32_0 : i32, i32
  }
  func.func @transform_4(%arg0: i32) -> (i32, i32) {
    %c0_i32 = arith.constant 0 : i32
    %c0_i32_0 = arith.constant 0 : i32
    %c0_i32_1 = arith.constant 0 : i32
    return %c0_i32, %c0_i32_0 : i32, i32
  }
  func.func @transform_5(%arg0: i32) -> (i32, i32) {
    %c0_i32 = arith.constant 0 : i32
    %c0_i32_0 = arith.constant 0 : i32
    return %arg0, %c0_i32 : i32, i32
  }
}

</mosaic_0001>

<llo_original>
// kernel: classifier_forward.1
$region0: #{classifier_forward.1}
  #allocation0 [shape = 'u32[]', space=smem, size = 0x4, offset = 0x4, fixed_abs, tag = 'smem constant byte address 0x4 - core index']
  #allocation1 [shape = 'u32[144,128]{1,0:T(1,128)}', space=vmem, size = 0x12000, scoped, tag = 'internal scratch']
  %s0 = inlined_call_operand.vmem [shape: f32[4,32], index: 0, kind: input, shape index: {}]
  %s1 = inlined_call_operand.vmem [shape: f32[32,50], index: 1, kind: input, shape index: {}]
  %s2 = inlined_call_operand.vmem [shape: f32[1,50], index: 2, kind: input, shape index: {}]
  %s3 = inlined_call_operand.vmem [shape: f32[50,4], index: 3, kind: input, shape index: {}]
  %s4 = inlined_call_operand.vmem [shape: f32[1,4], index: 4, kind: input, shape index: {}]
  %s5 = inlined_call_operand.hbm [shape: f32[4,4], index: 5, kind: output, shape index: {}]
  %s6 = sld [smem:[#allocation0]]
  $region30: #{classifier_forward.1} parent=0
    _
  %s8 = ssub.s32 1, %s6
  %s9 = scalar_select 0, %s8, %s6
  $region1: #{classifier_forward.1} parent=0
    #allocation2 [shape = 'u8[4096]{0}', space=vmem, size = 0x1000, scoped, tag = 'output window, operand 0, single buffered']
    #allocation3 [shape = 's32[1]{0}', space=sflag, size = 0x4, scoped, tag = 'scoped memory for classifier_forward.1']
    %10 = vsyncpa [#allocation3], 0
    // Predicated region
    $region2: #{classifier_forward.1} parent=1 // pred_check
      _
    $region3: #{classifier_forward.1} parent=1 // pred_check_branch
      %12 = sbr.rel (0) target = $region5
    $region4: #{classifier_forward.1} parent=1 // pred_region
      _
    $region5: #{classifier_forward.1} parent=1 // pred_fallthru
      _
    // Predicated region
    $region6: #{classifier_forward.1} parent=1 // pred_check
      _
    $region7: #{classifier_forward.1} parent=1 // pred_check_branch
      %14 = sbr.rel (0) target = $region9
    $region8: #{classifier_forward.1} parent=1 // pred_region
      _
    $region9: #{classifier_forward.1} parent=1 // pred_fallthru
      _
    // Predicated region
    $region10: #{classifier_forward.1} parent=1 // pred_check
      _
    $region11: #{classifier_forward.1} parent=1 // pred_check_branch
      %16 = sbr.rel (0) target = $region13
    $region12: #{classifier_forward.1} parent=1 // pred_region
      _
    $region13: #{classifier_forward.1} parent=1 // pred_fallthru
      _
    // Predicated region
    $region14: #{classifier_forward.1} parent=1 // pred_check
      _
    $region15: #{classifier_forward.1} parent=1 // pred_check_branch
      %18 = sbr.rel (0) target = $region17
    $region16: #{classifier_forward.1} parent=1 // pred_region
      _
    $region17: #{classifier_forward.1} parent=1 // pred_fallthru
      _
    // Predicated region
    $region18: #{classifier_forward.1} parent=1 // pred_check
      _
    $region19: #{classifier_forward.1} parent=1 // pred_check_branch
      %20 = sbr.rel (0) target = $region21
    $region20: #{classifier_forward.1} parent=1 // pred_region
      _
    $region21: #{classifier_forward.1} parent=1 // pred_fallthru
      _
    %v21 = vld [vmem:[%s0] sm:$0xff]
    %v22 = vld [vmem:[%s1] sm:$0xff]
    %v23 = vld [vmem:[%s1 + $0x8] sm:$0xff]
    %v24 = vld [vmem:[%s1 + $0x10] sm:$0xff]
    %v25 = vld [vmem:[%s1 + $0x18] sm:$0xff]
    %v26 = vld [vmem:[%s2] sm:$0x1]
    %v28 = vlaneseq
    %v29 = vshrl.u32 %v28, 7
    %v30 = vsub.s32 0, %v29
    %v31 = vrot.slane %v26, %v30
    %vm33 = vcmask 261120
    %v35 = vsel %vm33, %v21, 0
    %37 = vmatprep.subr.mxu0 0.0
    %38 = vmatpush1.msra.mxu0 0.0
    %39 = vmatprep.subr.mxu0 0.0
    %40 = vmatpush1.msra.mxu0 0.0
    %41 = vmatprep.subr.mxu0 0.0
    %42 = vmatpush1.msra.mxu0 0.0
    %43 = vmatprep.subr.mxu0 0.0
    %44 = vmatpush1.msra.mxu0 0.0
    %45 = vmatprep.subr.mxu0 0.0
    %46 = vmatpush1.msra.mxu0 0.0
    %47 = vmatprep.subr.mxu0 0.0
    %48 = vmatpush1.msra.mxu0 0.0
    %49 = vmatprep.subr.mxu0 0.0
    %50 = vmatpush1.msra.mxu0 0.0
    %51 = vmatprep.subr.mxu0 0.0
    %52 = vmatpush1.msra.mxu0 0.0
    %53 = vmatprep.subr.mxu0 0.0
    %54 = vmatpush1.msra.mxu0 0.0
    %55 = vmatprep.subr.mxu0 0.0
    %56 = vmatpush1.msra.mxu0 0.0
    %57 = vmatprep.subr.mxu0 0.0
    %58 = vmatpush1.msra.mxu0 0.0
    %59 = vmatprep.subr.mxu0 0.0
    %60 = vmatpush1.msra.mxu0 0.0
    %61 = vmatprep.subr.mxu0 0.0
    %62 = vmatpush1.msra.mxu0 %v25
    %63 = vmatprep.subr.mxu0 0.0
    %64 = vmatpush1.msra.mxu0 %v24
    %65 = vmatprep.subr.mxu0 0.0
    %66 = vmatpush1.msra.mxu0 %v23
    %67 = vmatprep.subr.mxu0 0.0
    %68 = vmatpush1.msra.mxu0 %v22
    %69 = vmatprep.subr.mxu0 0.0
    %70 = vmatpush2.msra.mxu0 0.0
    %71 = vmatprep.subr.mxu0 0.0
    %72 = vmatpush2.msra.mxu0 0.0
    %73 = vmatprep.subr.mxu0 0.0
    %74 = vmatpush2.msra.mxu0 0.0
    %75 = vmatprep.subr.mxu0 0.0
    %76 = vmatpush2.msra.mxu0 0.0
    %77 = vmatprep.subr.mxu0 0.0
    %78 = vmatpush2.msra.mxu0 0.0
    %79 = vmatprep.subr.mxu0 0.0
    %80 = vmatpush2.msra.mxu0 0.0
    %81 = vmatprep.subr.mxu0 0.0
    %82 = vmatpush2.msra.mxu0 0.0
    %83 = vmatprep.subr.mxu0 0.0
    %84 = vmatpush2.msra.mxu0 0.0
    %85 = vmatprep.subr.mxu0 0.0
    %86 = vmatpush2.msra.mxu0 0.0
    %87 = vmatprep.subr.mxu0 0.0
    %88 = vmatpush2.msra.mxu0 0.0
    %89 = vmatprep.subr.mxu0 0.0
    %90 = vmatpush2.msra.mxu0 0.0
    %91 = vmatprep.subr.mxu0 0.0
    %92 = vmatpush2.msra.mxu0 0.0
    %93 = vmatprep.subr.mxu0 0.0
    %94 = vmatpush2.msra.mxu0 0.0
    %95 = vmatprep.subr.mxu0 0.0
    %96 = vmatpush2.msra.mxu0 0.0
    %97 = vmatprep.subr.mxu0 0.0
    %98 = vmatpush2.msra.mxu0 0.0
    %99 = vmatprep.subr.mxu0 0.0
    %100 = vmatpush2.msra.mxu0 0.0
    %101 = vmatprep.mubr.f32.mxu0 0.0
    %102 = vmatmul.mubr.f32.gmra.mxu0 %v35
    %v103 = vpop.f32.mrf.mxu0
    %v104 = vadd.f32 %v31, %v103
    %v105 = vpop.f32.mrf.mxu0
    %106 = vdwg.mxu0
    %v107 = vmax.f32 %v104, 0.0
    %v108 = vld [vmem:[%s3] sm:$0xff]
    %v109 = vld [vmem:[%s3 + $0x8] sm:$0xff]
    %v110 = vld [vmem:[%s3 + $0x10] sm:$0xff]
    %v111 = vld [vmem:[%s3 + $0x18] sm:$0xff]
    %v112 = vld [vmem:[%s3 + $0x20] sm:$0xff]
    %v113 = vld [vmem:[%s3 + $0x28] sm:$0xff]
    %v114 = vld [vmem:[%s3 + $0x30] sm:$0x3]
    %v115 = vld [vmem:[%s4] sm:$0x1]
    %v117 = vlaneseq
    %v118 = vshrl.u32 %v117, 7
    %v119 = vsub.s32 0, %v118
    %v120 = vrot.slane %v115, %v119
    %vm122 = vcmask 408576
    %v124 = vsel %vm122, %v107, 0
    %vm126 = vcmask 1041408
    %v128 = vsel %vm126, %v114, 0
    %130 = vmatprep.subr.mxu0 0.0
    %131 = vmatpush1.msra.mxu0 0.0
    %132 = vmatprep.subr.mxu0 0.0
    %133 = vmatpush1.msra.mxu0 0.0
    %134 = vmatprep.subr.mxu0 0.0
    %135 = vmatpush1.msra.mxu0 0.0
    %136 = vmatprep.subr.mxu0 0.0
    %137 = vmatpush1.msra.mxu0 0.0
    %138 = vmatprep.subr.mxu0 0.0
    %139 = vmatpush1.msra.mxu0 0.0
    %140 = vmatprep.subr.mxu0 0.0
    %141 = vmatpush1.msra.mxu0 0.0
    %142 = vmatprep.subr.mxu0 0.0
    %143 = vmatpush1.msra.mxu0 0.0
    %144 = vmatprep.subr.mxu0 0.0
    %145 = vmatpush1.msra.mxu0 0.0
    %146 = vmatprep.subr.mxu0 0.0
    %147 = vmatpush1.msra.mxu0 0.0
    %148 = vmatprep.subr.mxu0 0.0
    %149 = vmatpush1.msra.mxu0 %v128
    %150 = vmatprep.subr.mxu0 0.0
    %151 = vmatpush1.msra.mxu0 %v113
    %152 = vmatprep.subr.mxu0 0.0
    %153 = vmatpush1.msra.mxu0 %v112
    %154 = vmatprep.subr.mxu0 0.0
    %155 = vmatpush1.msra.mxu0 %v111
    %156 = vmatprep.subr.mxu0 0.0
    %157 = vmatpush1.msra.mxu0 %v110
    %158 = vmatprep.subr.mxu0 0.0
    %159 = vmatpush1.msra.mxu0 %v109
    %160 = vmatprep.subr.mxu0 0.0
    %161 = vmatpush1.msra.mxu0 %v108
    %162 = vmatprep.subr.mxu0 0.0
    %163 = vmatpush2.msra.mxu0 0.0
    %164 = vmatprep.subr.mxu0 0.0
    %165 = vmatpush2.msra.mxu0 0.0
    %166 = vmatprep.subr.mxu0 0.0
    %167 = vmatpush2.msra.mxu0 0.0
    %168 = vmatprep.subr.mxu0 0.0
    %169 = vmatpush2.msra.mxu0 0.0
    %170 = vmatprep.subr.mxu0 0.0
    %171 = vmatpush2.msra.mxu0 0.0
    %172 = vmatprep.subr.mxu0 0.0
    %173 = vmatpush2.msra.mxu0 0.0
    %174 = vmatprep.subr.mxu0 0.0
    %175 = vmatpush2.msra.mxu0 0.0
    %176 = vmatprep.subr.mxu0 0.0
    %177 = vmatpush2.msra.mxu0 0.0
    %178 = vmatprep.subr.mxu0 0.0
    %179 = vmatpush2.msra.mxu0 0.0
    %180 = vmatprep.subr.mxu0 0.0
    %181 = vmatpush2.msra.mxu0 0.0
    %182 = vmatprep.subr.mxu0 0.0
    %183 = vmatpush2.msra.mxu0 0.0
    %184 = vmatprep.subr.mxu0 0.0
    %185 = vmatpush2.msra.mxu0 0.0
    %186 = vmatprep.subr.mxu0 0.0
    %187 = vmatpush2.msra.mxu0 0.0
    %188 = vmatprep.subr.mxu0 0.0
    %189 = vmatpush2.msra.mxu0 0.0
    %190 = vmatprep.subr.mxu0 0.0
    %191 = vmatpush2.msra.mxu0 0.0
    %192 = vmatprep.subr.mxu0 0.0
    %193 = vmatpush2.msra.mxu0 0.0
    %194 = vmatprep.mubr.f32.mxu0 0.0
    %195 = vmatmul.mubr.f32.gmra.mxu0 %v124
    %v196 = vpop.f32.mrf.mxu0
    %v197 = vadd.f32 %v120, %v196
    %v198 = vpop.f32.mrf.mxu0
    %199 = vdwg.mxu0
    %vm200 = vcmask 31744
    %201 = vst.msk [vmem:[#allocation2] sm:$0xff] %vm200, %v197
    // Predicated region
    $region22: #{classifier_forward.1} parent=1 // pred_check
      _
    $region23: #{classifier_forward.1} parent=1 // pred_check_branch
      %203 = sbr.rel (0) target = $region25
    $region24: #{classifier_forward.1} parent=1 // pred_region
      %s205 = ssub.s32 128, 64
      %206 = vsyncadd [#allocation3], %s205
      %s207 = sshll.u32 [#allocation2], 4
      %s208 = int_to_ptr.vmem [resolvable:$true] %s207
      %213 = dma.vmem_to_hbm [thread:$0]  %s208, 64, %s5, [#allocation3], 64, 64, 4
    $region25: #{classifier_forward.1} parent=1 // pred_fallthru
      _
    // Predicated region
    $region26: #{classifier_forward.1} parent=1 // pred_check
      _
    $region27: #{classifier_forward.1} parent=1 // pred_check_branch
      %215 = sbr.rel (0) target = $region29
    $region28: #{classifier_forward.1} parent=1 // pred_region
      %216 = dma.done [#allocation3], 128
    $region29: #{classifier_forward.1} parent=1 // pred_fallthru
      _
    %217 = vsyncpa [#allocation3], 1

</llo_original>
